<compile_context>
chip_gen: v7x
topology: tpu7x:2x2x1
jax: 0.10.0
libtpu: 0.0.40
codegen_flags: <defaults>
</compile_context>

<pallas_src>
import jax
import jax.numpy as jnp
from jax.experimental import pallas as pl
from jax.experimental.pallas import tpu as pltpu


def _round_up(v, m):
    return ((v + m - 1) // m) * m


# ----------------------------- kernels ---------------------------------------

def _hardswish_like(l1):
    # PyTorch: l1 * clamp(l1 + 3, 0, 6) / 6   (divide folded into a multiply).
    return l1 * jnp.clip(l1 + 3.0, 0.0, 6.0) * (1.0 / 6.0)


def _kernel_fullk(x_ref, w_ref, b_ref, o_ref):
    """Whole K reduction in one block: no accumulator, no pl.when overhead."""
    acc = jnp.dot(x_ref[...], w_ref[...], preferred_element_type=jnp.float32)
    o_ref[...] = _hardswish_like(acc + b_ref[...]).astype(o_ref.dtype)


def _kernel_kred_f32out(x_ref, w_ref, b_ref, o_ref):
    """K-reduction grid, f32 output: accumulate directly into the resident o_ref."""
    k = pl.program_id(2)

    @pl.when(k == 0)
    def _init():
        o_ref[...] = jnp.zeros_like(o_ref)

    o_ref[...] += jnp.dot(x_ref[...], w_ref[...],
                          preferred_element_type=jnp.float32)

    @pl.when(k == pl.num_programs(2) - 1)
    def _finalize():
        o_ref[...] = _hardswish_like(o_ref[...] + b_ref[...])


def _kernel_kred_scratch(x_ref, w_ref, b_ref, o_ref, acc_ref):
    """K-reduction grid, non-f32 output: f32 VMEM accumulator scratch."""
    k = pl.program_id(2)

    @pl.when(k == 0)
    def _init():
        acc_ref[...] = jnp.zeros_like(acc_ref)

    acc_ref[...] += jnp.dot(x_ref[...], w_ref[...],
                            preferred_element_type=jnp.float32)

    @pl.when(k == pl.num_programs(2) - 1)
    def _finalize():
        o_ref[...] = _hardswish_like(acc_ref[...] + b_ref[...]).astype(o_ref.dtype)


# -------------------------- pallas_call driver --------------------------------

def _pallas_linear_hardswish(x_p, w_p, b_p, *, tm, tn, tk, out_dtype):
    Bp, INp = x_p.shape
    OUTp = w_p.shape[1]
    full_k = (tk == INp)

    if full_k:
        grid = (Bp // tm, OUTp // tn)
        kernel = _kernel_fullk
        in_specs = [
            pl.BlockSpec((tm, tk), lambda i, j: (i, 0)),   # x tile (full K)
            pl.BlockSpec((tk, tn), lambda i, j: (0, j)),   # w tile (full K)
            pl.BlockSpec((1, tn), lambda i, j: (0, j)),    # bias tile
        ]
        out_specs = pl.BlockSpec((tm, tn), lambda i, j: (i, j))
        scratch = []
        dims = ("parallel", "parallel")
    else:
        grid = (Bp // tm, OUTp // tn, INp // tk)
        in_specs = [
            pl.BlockSpec((tm, tk), lambda i, j, k: (i, k)),
            pl.BlockSpec((tk, tn), lambda i, j, k: (k, j)),
            pl.BlockSpec((1, tn), lambda i, j, k: (0, j)),
        ]
        out_specs = pl.BlockSpec((tm, tn), lambda i, j, k: (i, j))
        dims = ("parallel", "parallel", "arbitrary")
        if jnp.dtype(out_dtype) == jnp.dtype(jnp.float32):
            kernel = _kernel_kred_f32out
            scratch = []
        else:
            kernel = _kernel_kred_scratch
            scratch = [pltpu.VMEM((tm, tn), jnp.float32)]

    return pl.pallas_call(
        kernel,
        out_shape=jax.ShapeDtypeStruct((Bp, OUTp), out_dtype),
        grid_spec=pltpu.PrefetchScalarGridSpec(
            num_scalar_prefetch=0,
            grid=grid,
            in_specs=in_specs,
            out_specs=out_specs,
            scratch_shapes=scratch,
        ),
        compiler_params=pltpu.CompilerParams(
            dimension_semantics=dims,
            # Live tile footprint is a few MiB with these caps; 48 MiB is safe
            # on v7x (64 MiB physical) and v5e/v6e (128 MiB physical).
            vmem_limit_bytes=48 * 1024 * 1024,
        ),
    )(x_p, w_p, b_p)


# ---------------------------- tile selection ----------------------------------

def _choose_nk(IN, OUT, operand_dtype, tn_override=None, tk_override=None):
    op_bytes = jnp.dtype(operand_dtype).itemsize
    sublane = 32 // op_bytes                       # 8 for f32, 16 for bf16

    # N (lane) tiling: largest multiple of 128 (<= 512) that divides padded OUT.
    OUTp = _round_up(OUT, 128)
    if tn_override is not None:
        tn = tn_override
        OUTp = _round_up(OUTp, tn)
    else:
        tn = min(512, OUTp)
        while OUTp % tn != 0:
            tn -= 128

    # K tiling: collapse entirely when it fits a single big tile.
    if tk_override is not None:
        tk = tk_override
        INp = _round_up(IN, tk)
    elif IN <= 512:
        INp = _round_up(IN, sublane)               # no 128-padding blow-up
        tk = INp
    else:
        tk = 512
        INp = _round_up(IN, tk)

    return tn, tk, INp, OUTp, sublane


def _choose_m(B, sublane):
    tm = min(256, _round_up(B, sublane))
    Bp = _round_up(B, tm)
    return tm, Bp


# ------------------------------- public API ------------------------------------

def make_linear_hardswish(w, b, *, operand_dtype=None, out_dtype=None,
                          tn_override=None, tk_override=None):
    """Build the fused layer  y = l1 * clamp(l1+3, 0, 6) / 6,  l1 = x @ w.T + b.

    w: (OUT, IN) in PyTorch Linear layout.  The weight is transposed, padded
    and (optionally) cast to bf16 ONCE here; the returned jitted apply(x)
    only pads x and runs the Pallas kernel.
    """
    w = jnp.asarray(w)
    b = jnp.asarray(b)
    OUT, IN = w.shape
    operand_dtype = jnp.dtype(operand_dtype) if operand_dtype is not None else w.dtype

    tn, tk, INp, OUTp, sublane = _choose_nk(IN, OUT, operand_dtype,
                                            tn_override, tk_override)

    w_p = jnp.pad(w.T.astype(operand_dtype), ((0, INp - IN), (0, OUTp - OUT)))
    b_p = jnp.pad(b.astype(jnp.float32), (0, OUTp - OUT)).reshape(1, OUTp)

    @jax.jit
    def apply(x):
        B = x.shape[0]
        odt = jnp.dtype(out_dtype) if out_dtype is not None else x.dtype
        tm, Bp = _choose_m(B, sublane)

        # Megacore: keep >= 2 blocks on a parallel axis when possible so both
        # v7x TensorCores get work (padded OUT stays divisible by the new tn).
        tn_c, tm_c, Bp_c = tn, tm, Bp
        if Bp_c // tm_c == 1 and OUTp // tn_c == 1:
            if tn_c % 256 == 0:
                tn_c //= 2
            elif tm_c >= 2 * sublane:
                tm_c = _round_up(tm_c // 2, sublane)
                Bp_c = _round_up(B, tm_c)

        x_p = jnp.pad(x.astype(operand_dtype), ((0, Bp_c - B), (0, INp - IN)))
        out_p = _pallas_linear_hardswish(x_p, w_p, b_p, tm=tm_c, tn=tn_c, tk=tk,
                                         out_dtype=odt)
        return out_p[:B, :OUT]

    return apply


def linear_hardswish(x, w, b, **kwargs):
    """One-shot convenience wrapper (weight prep NOT cached across calls)."""
    return make_linear_hardswish(w, b, **kwargs)(x)


# --------------------------------- demo / test ---------------------------------

def _reference(x, w, b):
    l1 = x @ w.T + b
    return l1 * jnp.clip(l1 + 3.0, 0.0, 6.0) / 6.0


def _torch_like_linear_init(key, OUT, IN):
    kw, kb = jax.random.split(key)
    bound = 1.0 / (IN ** 0.5)
    w = jax.random.uniform(kw, (OUT, IN), jnp.float32, minval=-bound, maxval=bound)
    b = jax.random.uniform(kb, (OUT,), jnp.float32, minval=-bound, maxval=bound)
    return w, b


if __name__ == "__main__":
    key = jax.random.PRNGKey(0)
    k1, k2, k3, k4 = jax.random.split(key, 4)

    # --- Test 1: module-like small shapes (x = randn(., 20)); full-K fast path,
    #     exercises the unpadded-K / unaligned-OUT wrapper logic.
    B, IN, OUT = 4, 20, 16
    w1, b1 = _torch_like_linear_init(k1, OUT, IN)
    x1 = jax.random.normal(k2, (B, IN), dtype=jnp.float32)
    apply1 = make_linear_hardswish(w1, b1)
    out1 = jax.block_until_ready(apply1(x1))
    ref1 = _reference(x1, w1, b1)
    assert out1.shape == (B, OUT)
    assert jnp.allclose(out1, ref1, atol=1e-5, rtol=1e-5), "f32 full-K mismatch"

    # --- Test 2: K-reduction path (tk_override forces 2 K blocks), f32 output
    #     accumulated directly into the resident output tile (no scratch).
    B2, IN2, OUT2 = 16, 256, 128
    w2, b2 = _torch_like_linear_init(k3, OUT2, IN2)
    x2 = jax.random.normal(k4, (B2, IN2), dtype=jnp.float32)
    apply2 = make_linear_hardswish(w2, b2, tk_override=128)
    out2 = jax.block_until_ready(apply2(x2))
    ref2 = _reference(x2, w2, b2)
    assert jnp.allclose(out2, ref2, atol=1e-4, rtol=1e-4), "f32 K-red mismatch"

    # --- Test 3: bf16 operands + bf16 output (f32 accumulator scratch path).
    apply3 = make_linear_hardswish(w2, b2, operand_dtype=jnp.bfloat16,
                                   out_dtype=jnp.bfloat16, tk_override=128)
    out3 = jax.block_until_ready(apply3(x2))
    assert jnp.allclose(out3.astype(jnp.float32), ref2,
                        atol=5e-2, rtol=5e-2), "bf16 mismatch"

    print("KERNEL_OK")
</pallas_src>

<mosaic_0001>
module attributes {stable_mosaic.version = 11 : i64} {
  func.func @_kernel_fullk(%arg0: i32, %arg1: i32, %arg2: memref<8x24xf32, #tpu.memory_space<vmem>>, %arg3: memref<24x128xf32, #tpu.memory_space<vmem>>, %arg4: memref<1x128xf32, #tpu.memory_space<vmem>>, %arg5: memref<8x128xf32, #tpu.memory_space<vmem>>) attributes {dimension_semantics = [#tpu.dimension_semantics<parallel>, #tpu.dimension_semantics<parallel>], iteration_bounds = array<i64: 1, 1>, scalar_prefetch = 0 : i64, scratch_operands = 0 : i64, tpu.core_type = #tpu.core_type<tc>, window_params = [{transform_indices = @transform_0, window_bounds = array<i64: 8, 24>}, {transform_indices = @transform_1, window_bounds = array<i64: 24, 128>}, {transform_indices = @transform_2, window_bounds = array<i64: 1, 128>}, {transform_indices = @transform_3, window_bounds = array<i64: 8, 128>}]} {
    %c0 = arith.constant 0 : index
    %c0_0 = arith.constant 0 : index
    %0 = vector.load %arg2[%c0, %c0_0] : memref<8x24xf32, #tpu.memory_space<vmem>>, vector<8x24xf32>
    %c0_1 = arith.constant 0 : index
    %c0_2 = arith.constant 0 : index
    %1 = vector.load %arg3[%c0_1, %c0_2] : memref<24x128xf32, #tpu.memory_space<vmem>>, vector<24x128xf32>
    %cst = arith.constant dense<0.000000e+00> : vector<8x128xf32>
    %2 = tpu.matmul %0, %1, %cst {dimension_numbers = #tpu.dot_dimension_numbers<[1], [0], [0], [1], [0, 0, 1, 1], [], []>} : vector<8x24xf32>, vector<24x128xf32>, vector<8x128xf32> -> vector<8x128xf32>
    %c0_3 = arith.constant 0 : index
    %c0_4 = arith.constant 0 : index
    %3 = vector.load %arg4[%c0_3, %c0_4] : memref<1x128xf32, #tpu.memory_space<vmem>>, vector<1x128xf32>
    %4 = vector.broadcast %3 : vector<1x128xf32> to vector<8x128xf32>
    %5 = arith.addf %2, %4 : vector<8x128xf32>
    %cst_5 = arith.constant 3.000000e+00 : f32
    %6 = vector.broadcast %cst_5 : f32 to vector<8x128xf32>
    %7 = arith.addf %5, %6 : vector<8x128xf32>
    %cst_6 = arith.constant 0.000000e+00 : f32
    %cst_7 = arith.constant 6.000000e+00 : f32
    %8 = vector.broadcast %cst_6 : f32 to vector<8x128xf32>
    %9 = arith.maximumf %8, %7 : vector<8x128xf32>
    %10 = vector.broadcast %cst_7 : f32 to vector<8x128xf32>
    %11 = arith.minimumf %10, %9 : vector<8x128xf32>
    %12 = arith.mulf %5, %11 : vector<8x128xf32>
    %cst_8 = arith.constant 0.166666672 : f32
    %13 = vector.broadcast %cst_8 : f32 to vector<8x128xf32>
    %14 = arith.mulf %12, %13 : vector<8x128xf32>
    %c0_9 = arith.constant 0 : index
    %c0_10 = arith.constant 0 : index
    %15 = vector.load %arg5[%c0_9, %c0_10] : memref<8x128xf32, #tpu.memory_space<vmem>>, vector<8x128xf32>
    tpu.vector_store %arg5[%c0_9, %c0_10], %14 {strides = array<i32>} : memref<8x128xf32, #tpu.memory_space<vmem>>, vector<8x128xf32>,
    return
  }
  func.func @transform_0(%arg0: i32, %arg1: i32) -> (i32, i32) {
    %c0_i32 = arith.constant 0 : i32
    %c0_i32_0 = arith.constant 0 : i32
    return %arg0, %c0_i32 : i32, i32
  }
  func.func @transform_1(%arg0: i32, %arg1: i32) -> (i32, i32) {
    %c0_i32 = arith.constant 0 : i32
    %c0_i32_0 = arith.constant 0 : i32
    return %c0_i32, %arg1 : i32, i32
  }
  func.func @transform_2(%arg0: i32, %arg1: i32) -> (i32, i32) {
    %c0_i32 = arith.constant 0 : i32
    %c0_i32_0 = arith.constant 0 : i32
    return %c0_i32, %arg1 : i32, i32
  }
  func.func @transform_3(%arg0: i32, %arg1: i32) -> (i32, i32) {
    %c0_i32 = arith.constant 0 : i32
    return %arg0, %arg1 : i32, i32
  }
}

</mosaic_0001>

<llo_original>
// kernel: apply.1
$region0: #{apply.1}
  #allocation0 [shape = 'u32[]', space=smem, size = 0x4, offset = 0x4, fixed_abs, tag = 'smem constant byte address 0x4 - core index']
  #allocation1 [shape = 'u32[144,128]{1,0:T(1,128)}', space=vmem, size = 0x12000, scoped, tag = 'internal scratch']
  %s0 = inlined_call_operand.vmem [shape: f32[8,24], index: 0, kind: input, shape index: {}]
  %s1 = inlined_call_operand.hbm [shape: f32[24,128], index: 1, kind: input, shape index: {}]
  %s2 = inlined_call_operand.vmem [shape: f32[1,128], index: 2, kind: input, shape index: {}]
  %s3 = inlined_call_operand.vmem [shape: f32[8,128], index: 3, kind: output, shape index: {}]
  %s4 = sld [smem:[#allocation0]]
  $region26: #{apply.1} parent=0
    _
  %s6 = ssub.s32 1, %s4
  %s7 = scalar_select 0, %s6, %s4
  $region1: #{apply.1} parent=0
    #allocation2 [shape = 'u8[12288]{0}', space=vmem, size = 0x3000, scoped, tag = 'input window, operand 1, single buffered']
    #allocation3 [shape = 's32[1]{0}', space=sflag, size = 0x4, scoped, tag = 'scoped memory for apply.1']
    %8 = vsyncpa [#allocation3], 0
    // Predicated region
    $region2: #{apply.1} parent=1 // pred_check
      _
    $region3: #{apply.1} parent=1 // pred_check_branch
      %10 = sbr.rel (0) target = $region5
    $region4: #{apply.1} parent=1 // pred_region
      _
    $region5: #{apply.1} parent=1 // pred_fallthru
      _
    // Predicated region
    $region6: #{apply.1} parent=1 // pred_check
      _
    $region7: #{apply.1} parent=1 // pred_check_branch
      %12 = sbr.rel (0) target = $region9
    $region8: #{apply.1} parent=1 // pred_region
      %s14 = ssub.s32 384, 384
      %15 = vsyncadd [#allocation3], %s14
      %s16 = sshll.u32 [#allocation2], 4
      %s17 = int_to_ptr.vmem [resolvable:$true] %s16
      %22 = dma.hbm_to_vmem [thread:$0]  %s1, 384, %s17, [#allocation3], 128, 128, 8
    $region9: #{apply.1} parent=1 // pred_fallthru
      _
    // Predicated region
    $region10: #{apply.1} parent=1 // pred_check
      _
    $region11: #{apply.1} parent=1 // pred_check_branch
      %24 = sbr.rel (0) target = $region13
    $region12: #{apply.1} parent=1 // pred_region
      _
    $region13: #{apply.1} parent=1 // pred_fallthru
      _
    // Predicated region
    $region14: #{apply.1} parent=1 // pred_check
      _
    $region15: #{apply.1} parent=1 // pred_check_branch
      %26 = sbr.rel (0) target = $region17
    $region16: #{apply.1} parent=1 // pred_region
      %27 = dma.done [#allocation3], 384
    $region17: #{apply.1} parent=1 // pred_fallthru
      _
    %v28 = vld [vmem:[%s0] sm:$0xff]
    %v29 = vld [vmem:[#allocation2] sm:$0xff]
    %v30 = vld [vmem:[#allocation2 + $0x8] sm:$0xff]
    %v31 = vld [vmem:[#allocation2 + $0x10] sm:$0xff]
    %v32 = vld [vmem:[%s2] sm:$0x1]
    %v34 = vlaneseq
    %v35 = vshrl.u32 %v34, 7
    %v36 = vsub.s32 0, %v35
    %v37 = vrot.slane %v32, %v36
    %vm39 = vcmask 195584
    %v41 = vsel %vm39, %v28, 0
    %43 = vmatprep.subr.mxu0 0.0
    %44 = vmatpush1.msra.mxu0 %v29
    %45 = vmatprep.subr.mxu0 0.0
    %46 = vmatpush1.msra.mxu0 %v30
    %47 = vmatprep.subr.mxu0 0.0
    %48 = vmatpush1.msra.mxu0 %v31
    %49 = vmatprep.subr.mxu0 0.0
    %50 = vmatpush1.msra.mxu0 0.0
    %51 = vmatprep.subr.mxu0 0.0
    %52 = vmatpush1.msra.mxu0 0.0
    %53 = vmatprep.subr.mxu0 0.0
    %54 = vmatpush1.msra.mxu0 0.0
    %55 = vmatprep.subr.mxu0 0.0
    %56 = vmatpush1.msra.mxu0 0.0
    %57 = vmatprep.subr.mxu0 0.0
    %58 = vmatpush1.msra.mxu0 0.0
    %59 = vmatprep.subr.mxu0 0.0
    %60 = vmatpush1.msra.mxu0 0.0
    %61 = vmatprep.subr.mxu0 0.0
    %62 = vmatpush1.msra.mxu0 0.0
    %63 = vmatprep.subr.mxu0 0.0
    %64 = vmatpush1.msra.mxu0 0.0
    %65 = vmatprep.subr.mxu0 0.0
    %66 = vmatpush1.msra.mxu0 0.0
    %67 = vmatprep.subr.mxu0 0.0
    %68 = vmatpush1.msra.mxu0 0.0
    %69 = vmatprep.subr.mxu0 0.0
    %70 = vmatpush1.msra.mxu0 0.0
    %71 = vmatprep.subr.mxu0 0.0
    %72 = vmatpush1.msra.mxu0 0.0
    %73 = vmatprep.subr.mxu0 0.0
    %74 = vmatpush1.msra.mxu0 0.0
    %75 = vmatprep.subr.mxu0 0.0
    %76 = vmatpush1.msra.mxu0 0.0
    %77 = vmatprep.subr.mxu0 0.0
    %78 = vmatpush1.msra.mxu0 0.0
    %79 = vmatprep.subr.mxu0 0.0
    %80 = vmatpush1.msra.mxu0 0.0
    %81 = vmatprep.subr.mxu0 0.0
    %82 = vmatpush1.msra.mxu0 0.0
    %83 = vmatprep.subr.mxu0 0.0
    %84 = vmatpush1.msra.mxu0 0.0
    %85 = vmatprep.subr.mxu0 0.0
    %86 = vmatpush1.msra.mxu0 0.0
    %87 = vmatprep.subr.mxu0 0.0
    %88 = vmatpush1.msra.mxu0 0.0
    %89 = vmatprep.subr.mxu0 0.0
    %90 = vmatpush1.msra.mxu0 0.0
    %91 = vmatprep.subr.mxu0 0.0
    %92 = vmatpush1.msra.mxu0 0.0
    %93 = vmatprep.subr.mxu0 0.0
    %94 = vmatpush1.msra.mxu0 0.0
    %95 = vmatprep.subr.mxu0 0.0
    %96 = vmatpush1.msra.mxu0 0.0
    %97 = vmatprep.subr.mxu0 0.0
    %98 = vmatpush1.msra.mxu0 0.0
    %99 = vmatprep.subr.mxu0 0.0
    %100 = vmatpush1.msra.mxu0 0.0
    %101 = vmatprep.subr.mxu0 0.0
    %102 = vmatpush1.msra.mxu0 0.0
    %103 = vmatprep.subr.mxu0 0.0
    %104 = vmatpush1.msra.mxu0 0.0
    %105 = vmatprep.subr.mxu0 0.0
    %106 = vmatpush1.msra.mxu0 0.0
    %107 = vmatprep.mubr.f32.mxu0 0.0
    %108 = vmatmul.mubr.f32.gmra.mrb[0].mxu0 %v41
    %v109 = vpop.f32.mrb[0].mxu0
    %v110 = vadd.f32 %v37, %v109
    %v111 = vpop.f32.mrb[0].mxu0
    %112 = vdwg.mxu0
    %v113 = vadd.f32 %v110, 3.0
    %v114 = vmax.f32 %v113, 0.0
    %v115 = vmin.f32 %v114, 6.0
    %v116 = vmul.f32 %v110, %v115
    %v117 = vmul.f32 %v116, 0.16666667
    %118 = vst [vmem:[%s3] sm:$0xff] %v117
    // Predicated region
    $region18: #{apply.1} parent=1 // pred_check
      _
    $region19: #{apply.1} parent=1 // pred_check_branch
      %120 = sbr.rel (0) target = $region21
    $region20: #{apply.1} parent=1 // pred_region
      _
    $region21: #{apply.1} parent=1 // pred_fallthru
      _
    // Predicated region
    $region22: #{apply.1} parent=1 // pred_check
      _
    $region23: #{apply.1} parent=1 // pred_check_branch
      %122 = sbr.rel (0) target = $region25
    $region24: #{apply.1} parent=1 // pred_region
      _
    $region25: #{apply.1} parent=1 // pred_fallthru
      _
    %123 = vsyncpa [#allocation3], 1

</llo_original>
